<compile_context>
chip_gen: v7x
topology: tpu7x:2x2x1
jax: 0.10.0
libtpu: 0.0.40
codegen_flags: <defaults>
</compile_context>

<pallas_src>
import math

import jax
import jax.numpy as jnp
from jax.experimental import pallas as pl
from jax.experimental.pallas import tpu as pltpu


# ---------------------------------------------------------------------------
# Kernels
# ---------------------------------------------------------------------------
def _qgcn_batched_kernel(a_ref, y0_ref, x1_ref, wl_ref, bl_ref, br_ref, out_ref):
    """Several batch elements per grid step (small / medium N).

    a_ref:  (Bt, N, N)   A
    y0_ref: (Bt, N, O)   x0 @ W_r^T (folded in the wrapper)
    x1_ref: (Bt, N, L)
    wl_ref: (1, L)       left weight (row form)
    bl_ref: (1, 1)       left bias
    br_ref: (1, O)       right bias
    out_ref:(Bt, 1, O)
    """
    x1 = x1_ref[...]                                   # (Bt, N, L)
    a = a_ref[...]                                     # (Bt, N, N)
    y0 = y0_ref[...]                                   # (Bt, N, O)

    # u[b, n] = sum_l x1[b, n, l] * wl[l]        (VPU multiply + lane reduce)
    u = jnp.sum(x1 * wl_ref[...], axis=2, keepdims=True)            # (Bt, N, 1) f32
    # v[b, m] = sum_n u[b, n] * A[b, n, m] + b_l (no transpose of A; sublane reduce)
    v = jnp.sum(u * a, axis=1, keepdims=True) + bl_ref[0, 0]        # (Bt, 1, N) f32
    # out[b, o] = sum_n v[b, n] * y0[b, n, o] + b_r   (batched MXU matmul)
    o = jnp.einsum('bkn,bno->bko', v, y0,
                   preferred_element_type=jnp.float32) + br_ref[...]  # (Bt, 1, O)
    out_ref[...] = o.astype(out_ref.dtype)


def _qgcn_tiled_kernel(a_ref, y0_ref, x1_ref, wl_ref, bl_ref, br_ref,
                       out_ref, vrow_ref):
    """Row-tiled reduction over the node axis (large N).

    a_ref:  (1, Tn, N)   contiguous row tile of A
    y0_ref: (1, N, O)    x0 @ W_r^T (same block for every tile -> fetched once/batch)
    x1_ref: (1, Tn, L)
    out_ref:(1, O)
    vrow_ref: (1, N) f32 VMEM accumulator for v = u^T A
    """
    t = pl.program_id(1)

    @pl.when(t == 0)
    def _init():
        vrow_ref[...] = jnp.zeros_like(vrow_ref)

    a = a_ref[0]                                       # (Tn, N)
    x1 = x1_ref[0]                                     # (Tn, L)
    u = jnp.sum(x1 * wl_ref[...], axis=1, keepdims=True)            # (Tn, 1) f32
    vrow_ref[...] += jnp.sum(u * a, axis=0, keepdims=True)          # (1, N)  f32

    @pl.when(t == pl.num_programs(1) - 1)
    def _finalize():
        y0 = y0_ref[0]                                 # (N, O)
        v = vrow_ref[...] + bl_ref[0, 0]               # (1, N)
        o = jnp.dot(v, y0, preferred_element_type=jnp.float32) + br_ref[...]  # (1, O)
        out_ref[...] = o.astype(out_ref.dtype)


# ---------------------------------------------------------------------------
# Wrapper
# ---------------------------------------------------------------------------
def qgcn_last_layer(A, x0, x1, w_left, b_left, w_right, b_right,
                    *, batch_block=None, block_n=None, compute_dtype=None):
    """Pallas TPU implementation of QGCNLastLayer.forward.

    A:       (B, N, N)
    x0:      (B, N, R)
    x1:      (B, N, L)
    w_left:  (1, L)   torch Linear(L, 1) weight
    b_left:  (1,)     torch Linear(L, 1) bias
    w_right: (O, R)   torch Linear(R, O) weight
    b_right: (O,)     torch Linear(R, O) bias
    batch_block / block_n: optional tiling overrides (testing / tuning).
    compute_dtype: opt-in streaming dtype for A / x1 / y0 (e.g. jnp.bfloat16
                   halves HBM traffic; accumulation stays f32, numerics ~bf16).
    returns: (B, O) f32
    """
    A = jnp.asarray(A)
    x0 = jnp.asarray(x0)
    x1 = jnp.asarray(x1)
    B, N, _ = A.shape
    R = x0.shape[-1]
    L = x1.shape[-1]
    O = int(w_right.shape[0])

    wl = jnp.asarray(w_left, jnp.float32).reshape(1, L)       # (1, L) row form
    bl = jnp.asarray(b_left, jnp.float32).reshape(1, 1)       # (1, 1)
    wr = jnp.asarray(w_right, jnp.float32).reshape(O, R)      # (O, R)
    br = jnp.asarray(b_right, jnp.float32).reshape(1, O)      # (1, O)

    # Fold the right linear into x0: (v^T x0) W_r^T == v^T (x0 W_r^T).
    y0 = jnp.einsum('bnr,or->bno', x0.astype(jnp.float32), wr)  # (B, N, O)

    if compute_dtype is not None:
        A = A.astype(compute_dtype)
        x1 = x1.astype(compute_dtype)
        y0 = y0.astype(compute_dtype)

    itemsize = jnp.dtype(A.dtype).itemsize
    a_budget = 4 * 1024 * 1024   # per-step A bytes; x2 buffers << 16 MiB (v5e default)

    per_batch_bytes = N * (N + L + O) * itemsize
    use_tiled = (block_n is not None) or (per_batch_bytes > a_budget)

    if not use_tiled:
        # ---------------- batched path (small / medium N) ------------------
        if batch_block is not None:
            bt = max(1, int(batch_block))
        else:
            bt = max(1, min(B, a_budget // per_batch_bytes, 512))
            if bt < B and bt >= 8:
                bt = (bt // 8) * 8          # sublane-dense blocks when possible
        nb = -(-B // bt)
        Bp = nb * bt
        if Bp != B:
            pad = Bp - B
            A = jnp.pad(A, ((0, pad), (0, 0), (0, 0)))
            y0 = jnp.pad(y0, ((0, pad), (0, 0), (0, 0)))
            x1 = jnp.pad(x1, ((0, pad), (0, 0), (0, 0)))

        out = pl.pallas_call(
            _qgcn_batched_kernel,
            out_shape=jax.ShapeDtypeStruct((Bp, 1, O), jnp.float32),
            grid_spec=pltpu.PrefetchScalarGridSpec(
                num_scalar_prefetch=0,
                grid=(nb,),
                in_specs=[
                    pl.BlockSpec((bt, N, N), lambda i: (i, 0, 0)),   # A
                    pl.BlockSpec((bt, N, O), lambda i: (i, 0, 0)),   # y0 = x0 @ W_r^T
                    pl.BlockSpec((bt, N, L), lambda i: (i, 0, 0)),   # x1
                    pl.BlockSpec((1, L), lambda i: (0, 0)),          # w_left
                    pl.BlockSpec((1, 1), lambda i: (0, 0)),          # b_left
                    pl.BlockSpec((1, O), lambda i: (0, 0)),          # b_right
                ],
                out_specs=pl.BlockSpec((bt, 1, O), lambda i: (i, 0, 0)),
            ),
            compiler_params=pltpu.CompilerParams(
                dimension_semantics=("parallel",)),
        )(A, y0, x1, wl, bl, br)
        return out[:B, 0, :]

    # -------------------- row-tiled path (large N) -------------------------
    if block_n is not None:
        tn = max(8, (int(block_n) // 8) * 8)
    else:
        tn = max(8, min(a_budget // (N * itemsize), 2048))
        tn = max(8, (tn // 8) * 8)
    tn = min(tn, ((N + 7) // 8) * 8)
    nt = -(-N // tn)
    Np = nt * tn
    if Np != N:
        pad = Np - N                       # zero rows -> zero contribution to v
        A = jnp.pad(A, ((0, 0), (0, pad), (0, 0)))
        x1 = jnp.pad(x1, ((0, 0), (0, pad), (0, 0)))

    out = pl.pallas_call(
        _qgcn_tiled_kernel,
        out_shape=jax.ShapeDtypeStruct((B, O), jnp.float32),
        grid_spec=pltpu.PrefetchScalarGridSpec(
            num_scalar_prefetch=0,
            grid=(B, nt),
            in_specs=[
                pl.BlockSpec((1, tn, N), lambda b, t: (b, t, 0)),    # A row tile
                pl.BlockSpec((1, N, O), lambda b, t: (b, 0, 0)),     # y0 (once per b)
                pl.BlockSpec((1, tn, L), lambda b, t: (b, t, 0)),    # x1 row tile
                pl.BlockSpec((1, L), lambda b, t: (0, 0)),           # w_left
                pl.BlockSpec((1, 1), lambda b, t: (0, 0)),           # b_left
                pl.BlockSpec((1, O), lambda b, t: (0, 0)),           # b_right
            ],
            out_specs=pl.BlockSpec((1, O), lambda b, t: (b, 0)),
            scratch_shapes=[pltpu.VMEM((1, N), jnp.float32)],
        ),
        compiler_params=pltpu.CompilerParams(
            dimension_semantics=("parallel", "arbitrary")),
    )(A, y0, x1, wl, bl, br)
    return out


# ---------------------------------------------------------------------------
# Pure-JAX reference (mirrors the PyTorch forward exactly)
# ---------------------------------------------------------------------------
def qgcn_last_layer_ref(A, x0, x1, w_left, b_left, w_right, b_right):
    x1_A = jnp.matmul(jnp.transpose(x1, (0, 2, 1)), A)                 # (B, L, N)
    W2_x1_A = jnp.matmul(jnp.transpose(x1_A, (0, 2, 1)),
                         w_left.T) + b_left                            # (B, N, 1)
    W2_x1_A_x0 = jnp.matmul(jnp.transpose(W2_x1_A, (0, 2, 1)), x0)     # (B, 1, R)
    out = jnp.matmul(W2_x1_A_x0, w_right.T) + b_right                  # (B, 1, O)
    return jnp.squeeze(out, axis=1)                                    # (B, O)


if __name__ == "__main__":
    B, N = 2, 16
    left_in_dim, right_in_dim, out_dim = 4, 8, 6

    key = jax.random.PRNGKey(0)
    k_A, k_x0, k_x1, k_wl, k_bl, k_wr, k_br = jax.random.split(key, 7)

    A = jax.random.normal(k_A, (B, N, N), jnp.float32)
    x0 = jax.random.normal(k_x0, (B, N, right_in_dim), jnp.float32)
    x1 = jax.random.normal(k_x1, (B, N, left_in_dim), jnp.float32)

    # Parameter init consistent with reset_parameters(out_dim).
    w_left = jax.random.uniform(k_wl, (1, left_in_dim), jnp.float32, -1.0, 1.0)
    b_left = jax.random.uniform(k_bl, (1,), jnp.float32,
                                -1.0 / math.sqrt(left_in_dim),
                                1.0 / math.sqrt(left_in_dim))
    stdv_r = 1.0 / math.sqrt(out_dim)
    w_right = jax.random.uniform(k_wr, (out_dim, right_in_dim), jnp.float32,
                                 -stdv_r, stdv_r)
    b_right = jax.random.uniform(k_br, (out_dim,), jnp.float32,
                                 -1.0 / math.sqrt(right_in_dim),
                                 1.0 / math.sqrt(right_in_dim))

    ref = qgcn_last_layer_ref(A, x0, x1, w_left, b_left, w_right, b_right)

    # 1) default (batched) path.
    out = jax.block_until_ready(
        qgcn_last_layer(A, x0, x1, w_left, b_left, w_right, b_right))
    assert out.shape == (B, out_dim)
    assert jnp.allclose(out, ref, atol=1e-3, rtol=1e-3), (out, ref)

    # 2) row-tiled (large-N) accumulation path, forced with a small node tile.
    out_t = jax.block_until_ready(
        qgcn_last_layer(A, x0, x1, w_left, b_left, w_right, b_right, block_n=8))
    assert out_t.shape == (B, out_dim)
    assert jnp.allclose(out_t, ref, atol=1e-3, rtol=1e-3), (out_t, ref)

    # 3) batched path with batch padding (B not a multiple of the batch tile).
    B2 = 10
    k2_A, k2_x0, k2_x1 = jax.random.split(jax.random.PRNGKey(1), 3)
    A2 = jax.random.normal(k2_A, (B2, N, N), jnp.float32)
    x02 = jax.random.normal(k2_x0, (B2, N, right_in_dim), jnp.float32)
    x12 = jax.random.normal(k2_x1, (B2, N, left_in_dim), jnp.float32)
    ref2 = qgcn_last_layer_ref(A2, x02, x12, w_left, b_left, w_right, b_right)
    out2 = jax.block_until_ready(
        qgcn_last_layer(A2, x02, x12, w_left, b_left, w_right, b_right,
                        batch_block=8))
    assert out2.shape == (B2, out_dim)
    assert jnp.allclose(out2, ref2, atol=1e-3, rtol=1e-3), (out2, ref2)

    print("KERNEL_OK")
</pallas_src>

<mosaic_0001>
module attributes {stable_mosaic.version = 11 : i64} {
  func.func @_qgcn_batched_kernel(%arg0: i32, %arg1: memref<2x16x16xf32, #tpu.memory_space<vmem>>, %arg2: memref<2x16x6xf32, #tpu.memory_space<vmem>>, %arg3: memref<2x16x4xf32, #tpu.memory_space<vmem>>, %arg4: memref<1x4xf32, #tpu.memory_space<vmem>>, %arg5: memref<1x1xf32, #tpu.memory_space<vmem>>, %arg6: memref<1x6xf32, #tpu.memory_space<vmem>>, %arg7: memref<2x1x6xf32, #tpu.memory_space<vmem>>) attributes {dimension_semantics = [#tpu.dimension_semantics<parallel>], iteration_bounds = array<i64: 1>, scalar_prefetch = 0 : i64, scratch_operands = 0 : i64, tpu.core_type = #tpu.core_type<tc>, window_params = [{transform_indices = @transform_0, window_bounds = array<i64: 2, 16, 16>}, {transform_indices = @transform_1, window_bounds = array<i64: 2, 16, 6>}, {transform_indices = @transform_2, window_bounds = array<i64: 2, 16, 4>}, {pipeline_mode = #tpu.pipeline_mode<synchronous>, transform_indices = @transform_3, window_bounds = array<i64: 1, 4>}, {pipeline_mode = #tpu.pipeline_mode<synchronous>, transform_indices = @transform_4, window_bounds = array<i64: 1, 1>}, {pipeline_mode = #tpu.pipeline_mode<synchronous>, transform_indices = @transform_5, window_bounds = array<i64: 1, 6>}, {transform_indices = @transform_6, window_bounds = array<i64: 2, 1, 6>}]} {
    %c0 = arith.constant 0 : index
    %c0_0 = arith.constant 0 : index
    %c0_1 = arith.constant 0 : index
    %0 = vector.load %arg3[%c0, %c0_0, %c0_1] : memref<2x16x4xf32, #tpu.memory_space<vmem>>, vector<2x16x4xf32>
    %c0_2 = arith.constant 0 : index
    %c0_3 = arith.constant 0 : index
    %c0_4 = arith.constant 0 : index
    %1 = vector.load %arg1[%c0_2, %c0_3, %c0_4] : memref<2x16x16xf32, #tpu.memory_space<vmem>>, vector<2x16x16xf32>
    %c0_5 = arith.constant 0 : index
    %c0_6 = arith.constant 0 : index
    %c0_7 = arith.constant 0 : index
    %2 = vector.load %arg2[%c0_5, %c0_6, %c0_7] : memref<2x16x6xf32, #tpu.memory_space<vmem>>, vector<2x16x6xf32>
    %c0_8 = arith.constant 0 : index
    %c0_9 = arith.constant 0 : index
    %3 = vector.load %arg4[%c0_8, %c0_9] : memref<1x4xf32, #tpu.memory_space<vmem>>, vector<1x4xf32>
    %4 = vector.shape_cast %3 : vector<1x4xf32> to vector<1x1x4xf32>
    %5 = vector.broadcast %4 : vector<1x1x4xf32> to vector<2x16x4xf32>
    %6 = arith.mulf %0, %5 : vector<2x16x4xf32>
    %cst = arith.constant dense<0.000000e+00> : vector<2x16xf32>
    %7 = vector.multi_reduction <add>, %6, %cst [2] : vector<2x16x4xf32> to vector<2x16xf32>
    %8 = vector.shape_cast %7 : vector<2x16xf32> to vector<2x16x1xf32>
    %9 = vector.broadcast %8 : vector<2x16x1xf32> to vector<2x16x16xf32>
    %10 = arith.mulf %9, %1 : vector<2x16x16xf32>
    %cst_10 = arith.constant dense<0.000000e+00> : vector<2x16xf32>
    %11 = vector.multi_reduction <add>, %10, %cst_10 [1] : vector<2x16x16xf32> to vector<2x16xf32>
    %12 = vector.shape_cast %11 : vector<2x16xf32> to vector<2x1x16xf32>
    %c0_11 = arith.constant 0 : index
    %c0_12 = arith.constant 0 : index
    %13 = vector.load %arg5[%c0_11, %c0_12] : memref<1x1xf32, #tpu.memory_space<vmem>>, vector<1x1xf32>
    %14 = vector.extract %13[0, 0] : f32 from vector<1x1xf32>
    %15 = vector.broadcast %14 : f32 to vector<2x1x16xf32>
    %16 = arith.addf %12, %15 : vector<2x1x16xf32>
    "tpu.trace_start"() <{level = 10 : i32, message = "bkn,bno->bko"}> : () -> ()
    %cst_13 = arith.constant dense<0.000000e+00> : vector<2x1x6xf32>
    %17 = tpu.matmul %16, %2, %cst_13 {dimension_numbers = #tpu.dot_dimension_numbers<[2], [1], [1], [2], [0, 0, 0, 1, 1, 2], [0], [0]>} : vector<2x1x16xf32>, vector<2x16x6xf32>, vector<2x1x6xf32> -> vector<2x1x6xf32>
    "tpu.trace_stop"() : () -> ()
    %c0_14 = arith.constant 0 : index
    %c0_15 = arith.constant 0 : index
    %18 = vector.load %arg6[%c0_14, %c0_15] : memref<1x6xf32, #tpu.memory_space<vmem>>, vector<1x6xf32>
    %19 = vector.shape_cast %18 : vector<1x6xf32> to vector<1x1x6xf32>
    %20 = vector.broadcast %19 : vector<1x1x6xf32> to vector<2x1x6xf32>
    %21 = arith.addf %17, %20 : vector<2x1x6xf32>
    %c0_16 = arith.constant 0 : index
    %c0_17 = arith.constant 0 : index
    %c0_18 = arith.constant 0 : index
    %22 = vector.load %arg7[%c0_16, %c0_17, %c0_18] : memref<2x1x6xf32, #tpu.memory_space<vmem>>, vector<2x1x6xf32>
    tpu.vector_store %arg7[%c0_16, %c0_17, %c0_18], %21 {strides = array<i32>} : memref<2x1x6xf32, #tpu.memory_space<vmem>>, vector<2x1x6xf32>,
    return
  }
  func.func @transform_0(%arg0: i32) -> (i32, i32, i32) {
    %c0_i32 = arith.constant 0 : i32
    %c0_i32_0 = arith.constant 0 : i32
    %c0_i32_1 = arith.constant 0 : i32
    return %arg0, %c0_i32, %c0_i32_0 : i32, i32, i32
  }
  func.func @transform_1(%arg0: i32) -> (i32, i32, i32) {
    %c0_i32 = arith.constant 0 : i32
    %c0_i32_0 = arith.constant 0 : i32
    %c0_i32_1 = arith.constant 0 : i32
    return %arg0, %c0_i32, %c0_i32_0 : i32, i32, i32
  }
  func.func @transform_2(%arg0: i32) -> (i32, i32, i32) {
    %c0_i32 = arith.constant 0 : i32
    %c0_i32_0 = arith.constant 0 : i32
    %c0_i32_1 = arith.constant 0 : i32
    return %arg0, %c0_i32, %c0_i32_0 : i32, i32, i32
  }
  func.func @transform_3(%arg0: i32) -> (i32, i32) {
    %c0_i32 = arith.constant 0 : i32
    %c0_i32_0 = arith.constant 0 : i32
    %c0_i32_1 = arith.constant 0 : i32
    return %c0_i32, %c0_i32_0 : i32, i32
  }
  func.func @transform_4(%arg0: i32) -> (i32, i32) {
    %c0_i32 = arith.constant 0 : i32
    %c0_i32_0 = arith.constant 0 : i32
    %c0_i32_1 = arith.constant 0 : i32
    return %c0_i32, %c0_i32_0 : i32, i32
  }
  func.func @transform_5(%arg0: i32) -> (i32, i32) {
    %c0_i32 = arith.constant 0 : i32
    %c0_i32_0 = arith.constant 0 : i32
    %c0_i32_1 = arith.constant 0 : i32
    return %c0_i32, %c0_i32_0 : i32, i32
  }
  func.func @transform_6(%arg0: i32) -> (i32, i32, i32) {
    %c0_i32 = arith.constant 0 : i32
    %c0_i32_0 = arith.constant 0 : i32
    %c0_i32_1 = arith.constant 0 : i32
    return %arg0, %c0_i32, %c0_i32_0 : i32, i32, i32
  }
}

</mosaic_0001>

<llo_original>
// kernel: tpu_custom_call.1
$region0: #{tpu_custom_call.1}
  #allocation0 [shape = 'u32[]', space=smem, size = 0x4, offset = 0x4, fixed_abs, tag = 'smem constant byte address 0x4 - core index']
  #allocation1 [shape = 'u32[144,128]{1,0:T(1,128)}', space=vmem, size = 0x12000, scoped, tag = 'internal scratch']
  #allocation2 [shape = 'f32[1,1]{1,0:T(1,128)S(1)}', space=vmem, size = 0x200, scoped, tag = 'scoped memory for tpu_custom_call.1']
  %s0 = inlined_call_operand.vmem [shape: f32[2,16,16], index: 0, kind: input, shape index: {}]
  %s1 = inlined_call_operand.vmem [shape: f32[2,16,6], index: 1, kind: input, shape index: {}]
  %s2 = inlined_call_operand.vmem [shape: f32[2,16,4], index: 2, kind: input, shape index: {}]
  %s3 = inlined_call_operand.vmem [shape: f32[1,4], index: 3, kind: input, shape index: {}]
  %s4 = inlined_call_operand.<no memory space> [shape: f32[1,1], index: 4, kind: input, shape index: {}]
  %s5 = inlined_call_operand.vmem [shape: f32[1,6], index: 5, kind: input, shape index: {}]
  %s6 = inlined_call_operand.hbm [shape: f32[2,1,6], index: 6, kind: output, shape index: {}]
  %s7 = sld [smem:[#allocation0]]
  $region34: #{tpu_custom_call.1} parent=0
    _
  %s9 = ssub.s32 1, %s7
  %s10 = scalar_select 0, %s9, %s7
  %v11 = vstv %s4
  %12 = vst [vmem:[#allocation2] sm:$0x1] %v11
  $region1: #{tpu_custom_call.1} parent=0
    #allocation3 [shape = 'u8[1024]{0}', space=vmem, size = 0x400, scoped, tag = 'output window, operand 0, single buffered']
    #allocation4 [shape = 's32[1]{0}', space=sflag, size = 0x4, scoped, tag = 'scoped memory for tpu_custom_call.1']
    %13 = vsyncpa [#allocation4], 0
    // Predicated region
    $region2: #{tpu_custom_call.1} parent=1 // pred_check
      _
    $region3: #{tpu_custom_call.1} parent=1 // pred_check_branch
      %15 = sbr.rel (0) target = $region5
    $region4: #{tpu_custom_call.1} parent=1 // pred_region
      _
    $region5: #{tpu_custom_call.1} parent=1 // pred_fallthru
      _
    // Predicated region
    $region6: #{tpu_custom_call.1} parent=1 // pred_check
      _
    $region7: #{tpu_custom_call.1} parent=1 // pred_check_branch
      %17 = sbr.rel (0) target = $region9
    $region8: #{tpu_custom_call.1} parent=1 // pred_region
      _
    $region9: #{tpu_custom_call.1} parent=1 // pred_fallthru
      _
    // Predicated region
    $region10: #{tpu_custom_call.1} parent=1 // pred_check
      _
    $region11: #{tpu_custom_call.1} parent=1 // pred_check_branch
      %19 = sbr.rel (0) target = $region13
    $region12: #{tpu_custom_call.1} parent=1 // pred_region
      _
    $region13: #{tpu_custom_call.1} parent=1 // pred_fallthru
      _
    // Predicated region
    $region14: #{tpu_custom_call.1} parent=1 // pred_check
      _
    $region15: #{tpu_custom_call.1} parent=1 // pred_check_branch
      %21 = sbr.rel (0) target = $region17
    $region16: #{tpu_custom_call.1} parent=1 // pred_region
      _
    $region17: #{tpu_custom_call.1} parent=1 // pred_fallthru
      _
    // Predicated region
    $region18: #{tpu_custom_call.1} parent=1 // pred_check
      _
    $region19: #{tpu_custom_call.1} parent=1 // pred_check_branch
      %23 = sbr.rel (0) target = $region21
    $region20: #{tpu_custom_call.1} parent=1 // pred_region
      _
    $region21: #{tpu_custom_call.1} parent=1 // pred_fallthru
      _
    // Predicated region
    $region22: #{tpu_custom_call.1} parent=1 // pred_check
      _
    $region23: #{tpu_custom_call.1} parent=1 // pred_check_branch
      %25 = sbr.rel (0) target = $region25
    $region24: #{tpu_custom_call.1} parent=1 // pred_region
      _
    $region25: #{tpu_custom_call.1} parent=1 // pred_fallthru
      _
    %v26 = vld [vmem:[%s2] sm:$0xff]
    %v27 = vld [vmem:[%s2 + $0x8] sm:$0xff]
    %v28 = vld [vmem:[%s2 + $0x10] sm:$0xff]
    %v29 = vld [vmem:[%s2 + $0x18] sm:$0xff]
    %v30 = vld [vmem:[%s0] sm:$0xff]
    %v31 = vld [vmem:[%s0 + $0x8] sm:$0xff]
    %v32 = vld [vmem:[%s0 + $0x10] sm:$0xff]
    %v33 = vld [vmem:[%s0 + $0x18] sm:$0xff]
    %v34 = vld [vmem:[%s1] sm:$0xff]
    %v35 = vld [vmem:[%s1 + $0x8] sm:$0xff]
    %v36 = vld [vmem:[%s1 + $0x10] sm:$0xff]
    %v37 = vld [vmem:[%s1 + $0x18] sm:$0xff]
    %v38 = vld [vmem:[%s3] sm:$0x1]
    %v40 = vlaneseq
    %v41 = vshrl.u32 %v40, 7
    %v42 = vsub.s32 0, %v41
    %v43 = vrot.slane %v38, %v42
    %v45 = vmul.f32 %v26, %v43
    %v46 = vmul.f32 %v27, %v43
    %v47 = vmul.f32 %v28, %v43
    %v48 = vmul.f32 %v29, %v43
    %vm49 = vcmask 31744
    %v50 = vsel %vm49, %v45, 0.0
    %51 = vadd.xlane.f32.xlu0 %v50
    %v52 = vpop.xlane.xlu0 %51
    %v53 = vsel %vm49, %v46, 0.0
    %54 = vadd.xlane.f32.xlu0 %v53
    %v55 = vpop.xlane.xlu0 %54
    %v56 = vsel %vm49, %v47, 0.0
    %57 = vadd.xlane.f32.xlu0 %v56
    %v58 = vpop.xlane.xlu0 %57
    %v59 = vsel %vm49, %v48, 0.0
    %60 = vadd.xlane.f32.xlu0 %v59
    %v61 = vpop.xlane.xlu0 %60
    %v62 = vmul.f32 %v52, %v30
    %v63 = vmul.f32 %v55, %v31
    %v64 = vmul.f32 %v58, %v32
    %v65 = vmul.f32 %v61, %v33
    %vm66 = vcmask 130048
    %v67 = vsel %vm66, %v62, 0.0
    %v68 = vsel %vm66, %v63, 0.0
    %v69 = vadd.f32 %v67, %v68
    %v70 = vrot.slane %v69, 4
    %v71 = vadd.f32 %v69, %v70
    %v72 = vrot.slane %v71, 2
    %v73 = vadd.f32 %v71, %v72
    %v74 = vrot.slane %v73, 1
    %v75 = vadd.f32 %v73, %v74
    %v76 = vsel %vm66, %v64, 0.0
    %v77 = vsel %vm66, %v65, 0.0
    %v78 = vadd.f32 %v76, %v77
    %v79 = vrot.slane %v78, 4
    %v80 = vadd.f32 %v78, %v79
    %v81 = vrot.slane %v80, 2
    %v82 = vadd.f32 %v80, %v81
    %v83 = vrot.slane %v82, 1
    %v84 = vadd.f32 %v82, %v83
    %v85 = vld [vmem:[#allocation2] sm:$0x1]
    %s86 = vtos %v85
    %v87 = vstv %s86
    %v88 = vadd.f32 %v75, %v87
    %v89 = vadd.f32 %v84, %v87
    %v90 = vld [vmem:[%s5] sm:$0x1]
    %v92 = vsel %vm66, %v88, 0
    %94 = vmatprep.subr.mxu0 0.0
    %95 = vmatpush1.msra.mxu0 %v34
    %96 = vmatprep.subr.mxu0 0.0
    %97 = vmatpush1.msra.mxu0 %v35
    %98 = vmatprep.subr.mxu0 0.0
    %99 = vmatpush1.msra.mxu0 0.0
    %100 = vmatprep.subr.mxu0 0.0
    %101 = vmatpush1.msra.mxu0 0.0
    %102 = vmatprep.subr.mxu0 0.0
    %103 = vmatpush1.msra.mxu0 0.0
    %104 = vmatprep.subr.mxu0 0.0
    %105 = vmatpush1.msra.mxu0 0.0
    %106 = vmatprep.subr.mxu0 0.0
    %107 = vmatpush1.msra.mxu0 0.0
    %108 = vmatprep.subr.mxu0 0.0
    %109 = vmatpush1.msra.mxu0 0.0
    %110 = vmatprep.subr.mxu0 0.0
    %111 = vmatpush1.msra.mxu0 0.0
    %112 = vmatprep.subr.mxu0 0.0
    %113 = vmatpush1.msra.mxu0 0.0
    %114 = vmatprep.subr.mxu0 0.0
    %115 = vmatpush1.msra.mxu0 0.0
    %116 = vmatprep.subr.mxu0 0.0
    %117 = vmatpush1.msra.mxu0 0.0
    %118 = vmatprep.subr.mxu0 0.0
    %119 = vmatpush1.msra.mxu0 0.0
    %120 = vmatprep.subr.mxu0 0.0
    %121 = vmatpush1.msra.mxu0 0.0
    %122 = vmatprep.subr.mxu0 0.0
    %123 = vmatpush1.msra.mxu0 0.0
    %124 = vmatprep.subr.mxu0 0.0
    %125 = vmatpush1.msra.mxu0 0.0
    %126 = vmatprep.subr.mxu0 0.0
    %127 = vmatpush1.msra.mxu0 0.0
    %128 = vmatprep.subr.mxu0 0.0
    %129 = vmatpush1.msra.mxu0 0.0
    %130 = vmatprep.subr.mxu0 0.0
    %131 = vmatpush1.msra.mxu0 0.0
    %132 = vmatprep.subr.mxu0 0.0
    %133 = vmatpush1.msra.mxu0 0.0
    %134 = vmatprep.subr.mxu0 0.0
    %135 = vmatpush1.msra.mxu0 0.0
    %136 = vmatprep.subr.mxu0 0.0
    %137 = vmatpush1.msra.mxu0 0.0
    %138 = vmatprep.subr.mxu0 0.0
    %139 = vmatpush1.msra.mxu0 0.0
    %140 = vmatprep.subr.mxu0 0.0
    %141 = vmatpush1.msra.mxu0 0.0
    %142 = vmatprep.subr.mxu0 0.0
    %143 = vmatpush1.msra.mxu0 0.0
    %144 = vmatprep.subr.mxu0 0.0
    %145 = vmatpush1.msra.mxu0 0.0
    %146 = vmatprep.subr.mxu0 0.0
    %147 = vmatpush1.msra.mxu0 0.0
    %148 = vmatprep.subr.mxu0 0.0
    %149 = vmatpush1.msra.mxu0 0.0
    %150 = vmatprep.subr.mxu0 0.0
    %151 = vmatpush1.msra.mxu0 0.0
    %152 = vmatprep.subr.mxu0 0.0
    %153 = vmatpush1.msra.mxu0 0.0
    %154 = vmatprep.subr.mxu0 0.0
    %155 = vmatpush1.msra.mxu0 0.0
    %156 = vmatprep.subr.mxu0 0.0
    %157 = vmatpush1.msra.mxu0 0.0
    %158 = vmatprep.mubr.f32.mxu0 0.0
    %159 = vmatmul.mubr.f32.gmra.mrb[0].mxu0 %v92
    %v160 = vpop.f32.mrb[0].mxu0
    %v161 = vadd.f32 %v90, %v160
    %v162 = vpop.f32.mrb[0].mxu0
    %163 = vdwg.mxu0
    %v165 = vsel %vm66, %v89, 0
    %167 = vmatprep.subr.mxu0 0.0
    %168 = vmatpush1.msra.mxu0 %v36
    %169 = vmatprep.subr.mxu0 0.0
    %170 = vmatpush1.msra.mxu0 %v37
    %171 = vmatprep.subr.mxu0 0.0
    %172 = vmatpush1.msra.mxu0 0.0
    %173 = vmatprep.subr.mxu0 0.0
    %174 = vmatpush1.msra.mxu0 0.0
    %175 = vmatprep.subr.mxu0 0.0
    %176 = vmatpush1.msra.mxu0 0.0
    %177 = vmatprep.subr.mxu0 0.0
    %178 = vmatpush1.msra.mxu0 0.0
    %179 = vmatprep.subr.mxu0 0.0
    %180 = vmatpush1.msra.mxu0 0.0
    %181 = vmatprep.subr.mxu0 0.0
    %182 = vmatpush1.msra.mxu0 0.0
    %183 = vmatprep.subr.mxu0 0.0
    %184 = vmatpush1.msra.mxu0 0.0
    %185 = vmatprep.subr.mxu0 0.0
    %186 = vmatpush1.msra.mxu0 0.0
    %187 = vmatprep.subr.mxu0 0.0
    %188 = vmatpush1.msra.mxu0 0.0
    %189 = vmatprep.subr.mxu0 0.0
    %190 = vmatpush1.msra.mxu0 0.0
    %191 = vmatprep.subr.mxu0 0.0
    %192 = vmatpush1.msra.mxu0 0.0
    %193 = vmatprep.subr.mxu0 0.0
    %194 = vmatpush1.msra.mxu0 0.0
    %195 = vmatprep.subr.mxu0 0.0
    %196 = vmatpush1.msra.mxu0 0.0
    %197 = vmatprep.subr.mxu0 0.0
    %198 = vmatpush1.msra.mxu0 0.0
    %199 = vmatprep.subr.mxu0 0.0
    %200 = vmatpush1.msra.mxu0 0.0
    %201 = vmatprep.subr.mxu0 0.0
    %202 = vmatpush1.msra.mxu0 0.0
    %203 = vmatprep.subr.mxu0 0.0
    %204 = vmatpush1.msra.mxu0 0.0
    %205 = vmatprep.subr.mxu0 0.0
    %206 = vmatpush1.msra.mxu0 0.0
    %207 = vmatprep.subr.mxu0 0.0
    %208 = vmatpush1.msra.mxu0 0.0
    %209 = vmatprep.subr.mxu0 0.0
    %210 = vmatpush1.msra.mxu0 0.0
    %211 = vmatprep.subr.mxu0 0.0
    %212 = vmatpush1.msra.mxu0 0.0
    %213 = vmatprep.subr.mxu0 0.0
    %214 = vmatpush1.msra.mxu0 0.0
    %215 = vmatprep.subr.mxu0 0.0
    %216 = vmatpush1.msra.mxu0 0.0
    %217 = vmatprep.subr.mxu0 0.0
    %218 = vmatpush1.msra.mxu0 0.0
    %219 = vmatprep.subr.mxu0 0.0
    %220 = vmatpush1.msra.mxu0 0.0
    %221 = vmatprep.subr.mxu0 0.0
    %222 = vmatpush1.msra.mxu0 0.0
    %223 = vmatprep.subr.mxu0 0.0
    %224 = vmatpush1.msra.mxu0 0.0
    %225 = vmatprep.subr.mxu0 0.0
    %226 = vmatpush1.msra.mxu0 0.0
    %227 = vmatprep.subr.mxu0 0.0
    %228 = vmatpush1.msra.mxu0 0.0
    %229 = vmatprep.subr.mxu0 0.0
    %230 = vmatpush1.msra.mxu0 0.0
    %231 = vmatprep.mubr.f32.mxu0 0.0
    %232 = vmatmul.mubr.f32.gmra.mrb[0].mxu0 %v165
    %v233 = vpop.f32.mrb[0].mxu0
    %v234 = vadd.f32 %v90, %v233
    %v235 = vpop.f32.mrb[0].mxu0
    %236 = vdwg.mxu0
    %vm237 = vcmask 40960
    %238 = vst.msk [vmem:[#allocation3] sm:$0x1] %vm237, %v161
    %239 = vst.msk [vmem:[#allocation3 + $0x1] sm:$0x1] %vm237, %v234
    // Predicated region
    $region26: #{tpu_custom_call.1} parent=1 // pred_check
      _
    $region27: #{tpu_custom_call.1} parent=1 // pred_check_branch
      %241 = sbr.rel (0) target = $region29
    $region28: #{tpu_custom_call.1} parent=1 // pred_region
      %s243 = ssub.s32 32, 32
      %244 = vsyncadd [#allocation4], %s243
      %s245 = sshll.u32 [#allocation3], 4
      %s246 = int_to_ptr.vmem [resolvable:$true] %s245
      %251 = dma.vmem_to_hbm [thread:$0]  %s246, 32, %s6, [#allocation4], 16, 16, 1
    $region29: #{tpu_custom_call.1} parent=1 // pred_fallthru
      _
    // Predicated region
    $region30: #{tpu_custom_call.1} parent=1 // pred_check
      _
    $region31: #{tpu_custom_call.1} parent=1 // pred_check_branch
      %253 = sbr.rel (0) target = $region33
    $region32: #{tpu_custom_call.1} parent=1 // pred_region
      %254 = dma.done [#allocation4], 32
    $region33: #{tpu_custom_call.1} parent=1 // pred_fallthru
      _
    %255 = vsyncpa [#allocation4], 1

</llo_original>
